<compile_context>
chip_gen: v7x
topology: tpu7x:2x2x1
jax: 0.10.0
libtpu: 0.0.40
codegen_flags: <defaults>
</compile_context>

<pallas_src>
import functools

import jax
import jax.numpy as jnp
from jax import lax
from jax.experimental import pallas as pl
from jax.experimental.pallas import tpu as pltpu


def _leaky_relu(v, negative_slope):
    return jnp.where(v > 0, v, negative_slope * v)


def direct_input_kernel(x_ref,
                        w1_ref, b1_ref,
                        w2_ref, b2_ref,
                        w3_ref, b3_ref,
                        w4_ref, b4_ref,
                        o_ref,
                        *, negative_slope):
    # x_ref: (tile, M) rows in natural layout. Weights/biases are resident.
    x = x_ref[...]

    # Layer 1: contract over M -> (16, tile). Rows land on the lane axis, so
    # everything downstream is lane-dense.
    h = lax.dot_general(w1_ref[...], x,
                        dimension_numbers=(((1,), (1,)), ((), ())),
                        preferred_element_type=jnp.float32)
    h = _leaky_relu(h + b1_ref[...], negative_slope)

    # Layer 2: (8, 16) @ (16, tile) -> (8, tile), f32 throughout.
    h = _leaky_relu(
        jnp.dot(w2_ref[...], h, preferred_element_type=jnp.float32) + b2_ref[...],
        negative_slope)

    # Layer 3: (4, 8) @ (8, tile) -> (4, tile).
    h = _leaky_relu(
        jnp.dot(w3_ref[...], h, preferred_element_type=jnp.float32) + b3_ref[...],
        negative_slope)

    # Layer 4 (4 -> 1): broadcast-MAC + sublane reduce on the VPU/XLU instead
    # of a degenerate 1-row MXU matmul.
    h4 = jnp.sum(w4_ref[...] * h, axis=0, keepdims=True) + b4_ref[...]
    o_ref[...] = _leaky_relu(h4, negative_slope).astype(o_ref.dtype)   # (1, tile)


def _tiling(R, M, itemsize, *, target_bytes=2 << 20, max_tile=16384, num_cores=1):
    """Pick rows-per-grid-step so each step moves ~target_bytes of x.

    Returns (tile, grid). Never pads R: small inputs get one full-array block,
    large inputs get 128-multiple row tiles with a Pallas-masked ragged edge.
    """
    rows = (target_bytes // max(1, M * itemsize)) // 128 * 128
    tile = int(max(128, min(max_tile, rows)))
    if R <= tile:
        return R, 1                              # single full-array block
    min_steps = max(1, 2 * num_cores)            # >=2 steps/core when possible
    while tile > 256 and pl.cdiv(R, tile) < min_steps:
        tile //= 2
    return tile, pl.cdiv(R, tile)


def direct_input_layer(x, params, *, negative_slope=0.1,
                       target_bytes=2 << 20, num_cores=1):
    """x: (B, N, M). Returns (B, N) float32 (eval-mode forward).

    params: 4 (weight, bias) pairs in PyTorch nn.Linear layout:
            weight (out_features, in_features), bias (out_features,).
    num_cores: TensorCores to keep fed (2 on v7x); only affects tiling.
    """
    B, N, M = x.shape
    R = B * N
    xr = x.reshape(R, M)                          # metadata-only reshape

    (w1, b1), (w2, b2), (w3, b3), (w4, b4) = params
    f32 = jnp.float32
    w1k = w1.astype(f32)                          # (16, M)
    w2k = w2.astype(f32)                          # (8, 16)
    w3k = w3.astype(f32)                          # (4, 8)
    w4k = w4.T.astype(f32)                        # (4, 1)  VPU path
    b1k = b1.reshape(-1, 1).astype(f32)           # (16, 1)
    b2k = b2.reshape(-1, 1).astype(f32)           # (8, 1)
    b3k = b3.reshape(-1, 1).astype(f32)           # (4, 1)
    b4k = b4.reshape(-1, 1).astype(f32)           # (1, 1)

    tile, grid = _tiling(R, M, xr.dtype.itemsize,
                         target_bytes=target_bytes, num_cores=num_cores)

    rows = lambda i: (i, 0)     # x tiled along rows (sublane axis)
    lanes = lambda i: (0, i)    # output tiled along lanes (lane-dense stores)
    full = lambda i: (0, 0)     # resident weights / biases

    out = pl.pallas_call(
        functools.partial(direct_input_kernel, negative_slope=negative_slope),
        out_shape=jax.ShapeDtypeStruct((1, R), jnp.float32),
        grid_spec=pltpu.PrefetchScalarGridSpec(
            num_scalar_prefetch=0,
            grid=(grid,),
            in_specs=[
                pl.BlockSpec((tile, M), rows),
                pl.BlockSpec(w1k.shape, full), pl.BlockSpec(b1k.shape, full),
                pl.BlockSpec(w2k.shape, full), pl.BlockSpec(b2k.shape, full),
                pl.BlockSpec(w3k.shape, full), pl.BlockSpec(b3k.shape, full),
                pl.BlockSpec(w4k.shape, full), pl.BlockSpec(b4k.shape, full),
            ],
            out_specs=pl.BlockSpec((1, tile), lanes),
        ),
        compiler_params=pltpu.CompilerParams(
            dimension_semantics=("parallel",)),
    )(xr, w1k, b1k, w2k, b2k, w3k, b3k, w4k, b4k)

    return out[0].reshape(B, N)


def init_params(key, inputs_per_neuron):
    """PyTorch-style init: weight (out, in), bias (out,), uniform(+-1/sqrt(fan_in))."""
    dims = [(inputs_per_neuron, 16), (16, 8), (8, 4), (4, 1)]
    params = []
    for fan_in, fan_out in dims:
        key, kw, kb = jax.random.split(key, 3)
        bound = 1.0 / (fan_in ** 0.5)
        w = jax.random.uniform(kw, (fan_out, fan_in), jnp.float32, -bound, bound)
        b = jax.random.uniform(kb, (fan_out,), jnp.float32, -bound, bound)
        params.append((w, b))
    return params


def direct_input_layer_ref(x, params, negative_slope=0.1):
    """Pure-JAX reference (eval-mode dropout == identity)."""
    B, N, M = x.shape
    h = x.reshape(B * N, M)
    for w, b in params:
        h = _leaky_relu(h @ w.T + b, negative_slope)
    return h.reshape(B, N)


if __name__ == "__main__":
    key = jax.random.PRNGKey(0)

    batch, network_size, inputs_per_neuron = 2, 8, 32
    key, kx = jax.random.split(key)
    x = jax.random.normal(kx, (batch, network_size, inputs_per_neuron),
                          dtype=jnp.float32)
    params = init_params(key, inputs_per_neuron)

    ref = direct_input_layer_ref(x, params)
    out = jax.block_until_ready(direct_input_layer(x, params))
    assert out.shape == (batch, network_size)
    assert jnp.allclose(out, ref, atol=1e-5, rtol=1e-5), "single-tile mismatch"

    # Multi-tile path (tile divides the row count exactly).
    key, kx2 = jax.random.split(key)
    x2 = jax.random.normal(kx2, (2, 256, inputs_per_neuron), jnp.float32)  # R=512
    small_step = 128 * inputs_per_neuron * 4  # force tile=128 -> grid=4
    out2 = jax.block_until_ready(
        direct_input_layer(x2, params, target_bytes=small_step))
    assert jnp.allclose(out2, direct_input_layer_ref(x2, params),
                        atol=1e-5, rtol=1e-5), "multi-tile mismatch"

    # Ragged trailing tile (rows not a multiple of the tile; relies on Pallas
    # masked edge blocks, no padding pass over x).
    key, kx3 = jax.random.split(key)
    x3 = jax.random.normal(kx3, (3, 100, inputs_per_neuron), jnp.float32)  # R=300
    out3 = jax.block_until_ready(
        direct_input_layer(x3, params, target_bytes=small_step))
    assert jnp.allclose(out3, direct_input_layer_ref(x3, params),
                        atol=1e-5, rtol=1e-5), "ragged-tile mismatch"

    print("KERNEL_OK")
</pallas_src>

<mosaic_0001>
module attributes {stable_mosaic.version = 11 : i64} {
  func.func @direct_input_kernel(%arg0: i32, %arg1: memref<16x32xf32, #tpu.memory_space<vmem>>, %arg2: memref<16x32xf32, #tpu.memory_space<vmem>>, %arg3: memref<16x1xf32, #tpu.memory_space<vmem>>, %arg4: memref<8x16xf32, #tpu.memory_space<vmem>>, %arg5: memref<8x1xf32, #tpu.memory_space<vmem>>, %arg6: memref<4x8xf32, #tpu.memory_space<vmem>>, %arg7: memref<4x1xf32, #tpu.memory_space<vmem>>, %arg8: memref<4x1xf32, #tpu.memory_space<vmem>>, %arg9: memref<1x1xf32, #tpu.memory_space<vmem>>, %arg10: memref<1x16xf32, #tpu.memory_space<vmem>>) attributes {dimension_semantics = [#tpu.dimension_semantics<parallel>], iteration_bounds = array<i64: 1>, scalar_prefetch = 0 : i64, scratch_operands = 0 : i64, tpu.core_type = #tpu.core_type<tc>, window_params = [{transform_indices = @transform_0, window_bounds = array<i64: 16, 32>}, {pipeline_mode = #tpu.pipeline_mode<synchronous>, transform_indices = @transform_1, window_bounds = array<i64: 16, 32>}, {pipeline_mode = #tpu.pipeline_mode<synchronous>, transform_indices = @transform_2, window_bounds = array<i64: 16, 1>}, {pipeline_mode = #tpu.pipeline_mode<synchronous>, transform_indices = @transform_3, window_bounds = array<i64: 8, 16>}, {pipeline_mode = #tpu.pipeline_mode<synchronous>, transform_indices = @transform_4, window_bounds = array<i64: 8, 1>}, {pipeline_mode = #tpu.pipeline_mode<synchronous>, transform_indices = @transform_5, window_bounds = array<i64: 4, 8>}, {pipeline_mode = #tpu.pipeline_mode<synchronous>, transform_indices = @transform_6, window_bounds = array<i64: 4, 1>}, {pipeline_mode = #tpu.pipeline_mode<synchronous>, transform_indices = @transform_7, window_bounds = array<i64: 4, 1>}, {pipeline_mode = #tpu.pipeline_mode<synchronous>, transform_indices = @transform_8, window_bounds = array<i64: 1, 1>}, {transform_indices = @transform_9, window_bounds = array<i64: 1, 16>}]} {
    %c0 = arith.constant 0 : index
    %c0_0 = arith.constant 0 : index
    %0 = vector.load %arg1[%c0, %c0_0] : memref<16x32xf32, #tpu.memory_space<vmem>>, vector<16x32xf32>
    %c0_1 = arith.constant 0 : index
    %c0_2 = arith.constant 0 : index
    %1 = vector.load %arg2[%c0_1, %c0_2] : memref<16x32xf32, #tpu.memory_space<vmem>>, vector<16x32xf32>
    %cst = arith.constant dense<0.000000e+00> : vector<16x16xf32>
    %2 = tpu.matmul %1, %0, %cst {dimension_numbers = #tpu.dot_dimension_numbers<[1], [1], [0], [0], [0, 0, 1, 0], [], []>} : vector<16x32xf32>, vector<16x32xf32>, vector<16x16xf32> -> vector<16x16xf32>
    %c0_3 = arith.constant 0 : index
    %c0_4 = arith.constant 0 : index
    %3 = vector.load %arg3[%c0_3, %c0_4] : memref<16x1xf32, #tpu.memory_space<vmem>>, vector<16x1xf32>
    %4 = vector.broadcast %3 : vector<16x1xf32> to vector<16x16xf32>
    %5 = arith.addf %2, %4 : vector<16x16xf32>
    %cst_5 = arith.constant 0.000000e+00 : f32
    %6 = vector.broadcast %cst_5 : f32 to vector<16x16xf32>
    %7 = arith.cmpf ogt, %5, %6 : vector<16x16xf32>
    %cst_6 = arith.constant 1.000000e-01 : f32
    %8 = vector.broadcast %cst_6 : f32 to vector<16x16xf32>
    %9 = arith.mulf %8, %5 : vector<16x16xf32>
    %10 = arith.select %7, %5, %9 : vector<16x16xi1>, vector<16x16xf32>
    %c0_7 = arith.constant 0 : index
    %c0_8 = arith.constant 0 : index
    %11 = vector.load %arg4[%c0_7, %c0_8] : memref<8x16xf32, #tpu.memory_space<vmem>>, vector<8x16xf32>
    %cst_9 = arith.constant dense<0.000000e+00> : vector<8x16xf32>
    %12 = tpu.matmul %11, %10, %cst_9 {dimension_numbers = #tpu.dot_dimension_numbers<[1], [0], [0], [1], [0, 0, 1, 1], [], []>} : vector<8x16xf32>, vector<16x16xf32>, vector<8x16xf32> -> vector<8x16xf32>
    %c0_10 = arith.constant 0 : index
    %c0_11 = arith.constant 0 : index
    %13 = vector.load %arg5[%c0_10, %c0_11] : memref<8x1xf32, #tpu.memory_space<vmem>>, vector<8x1xf32>
    %14 = vector.broadcast %13 : vector<8x1xf32> to vector<8x16xf32>
    %15 = arith.addf %12, %14 : vector<8x16xf32>
    %cst_12 = arith.constant 0.000000e+00 : f32
    %16 = vector.broadcast %cst_12 : f32 to vector<8x16xf32>
    %17 = arith.cmpf ogt, %15, %16 : vector<8x16xf32>
    %cst_13 = arith.constant 1.000000e-01 : f32
    %18 = vector.broadcast %cst_13 : f32 to vector<8x16xf32>
    %19 = arith.mulf %18, %15 : vector<8x16xf32>
    %20 = arith.select %17, %15, %19 : vector<8x16xi1>, vector<8x16xf32>
    %c0_14 = arith.constant 0 : index
    %c0_15 = arith.constant 0 : index
    %21 = vector.load %arg6[%c0_14, %c0_15] : memref<4x8xf32, #tpu.memory_space<vmem>>, vector<4x8xf32>
    %cst_16 = arith.constant dense<0.000000e+00> : vector<4x16xf32>
    %22 = tpu.matmul %21, %20, %cst_16 {dimension_numbers = #tpu.dot_dimension_numbers<[1], [0], [0], [1], [0, 0, 1, 1], [], []>} : vector<4x8xf32>, vector<8x16xf32>, vector<4x16xf32> -> vector<4x16xf32>
    %c0_17 = arith.constant 0 : index
    %c0_18 = arith.constant 0 : index
    %23 = vector.load %arg7[%c0_17, %c0_18] : memref<4x1xf32, #tpu.memory_space<vmem>>, vector<4x1xf32>
    %24 = vector.broadcast %23 : vector<4x1xf32> to vector<4x16xf32>
    %25 = arith.addf %22, %24 : vector<4x16xf32>
    %cst_19 = arith.constant 0.000000e+00 : f32
    %26 = vector.broadcast %cst_19 : f32 to vector<4x16xf32>
    %27 = arith.cmpf ogt, %25, %26 : vector<4x16xf32>
    %cst_20 = arith.constant 1.000000e-01 : f32
    %28 = vector.broadcast %cst_20 : f32 to vector<4x16xf32>
    %29 = arith.mulf %28, %25 : vector<4x16xf32>
    %30 = arith.select %27, %25, %29 : vector<4x16xi1>, vector<4x16xf32>
    %c0_21 = arith.constant 0 : index
    %c0_22 = arith.constant 0 : index
    %31 = vector.load %arg8[%c0_21, %c0_22] : memref<4x1xf32, #tpu.memory_space<vmem>>, vector<4x1xf32>
    %32 = vector.broadcast %31 : vector<4x1xf32> to vector<4x16xf32>
    %33 = arith.mulf %32, %30 : vector<4x16xf32>
    %cst_23 = arith.constant dense<0.000000e+00> : vector<16xf32>
    %34 = vector.multi_reduction <add>, %33, %cst_23 [0] : vector<4x16xf32> to vector<16xf32>
    %35 = vector.shape_cast %34 : vector<16xf32> to vector<1x16xf32>
    %c0_24 = arith.constant 0 : index
    %c0_25 = arith.constant 0 : index
    %36 = vector.load %arg9[%c0_24, %c0_25] : memref<1x1xf32, #tpu.memory_space<vmem>>, vector<1x1xf32>
    %37 = vector.broadcast %36 : vector<1x1xf32> to vector<1x16xf32>
    %38 = arith.addf %35, %37 : vector<1x16xf32>
    %cst_26 = arith.constant 0.000000e+00 : f32
    %39 = vector.broadcast %cst_26 : f32 to vector<1x16xf32>
    %40 = arith.cmpf ogt, %38, %39 : vector<1x16xf32>
    %cst_27 = arith.constant 1.000000e-01 : f32
    %41 = vector.broadcast %cst_27 : f32 to vector<1x16xf32>
    %42 = arith.mulf %41, %38 : vector<1x16xf32>
    %43 = arith.select %40, %38, %42 : vector<1x16xi1>, vector<1x16xf32>
    %c0_28 = arith.constant 0 : index
    %c0_29 = arith.constant 0 : index
    %44 = vector.load %arg10[%c0_28, %c0_29] : memref<1x16xf32, #tpu.memory_space<vmem>>, vector<1x16xf32>
    tpu.vector_store %arg10[%c0_28, %c0_29], %43 {strides = array<i32>} : memref<1x16xf32, #tpu.memory_space<vmem>>, vector<1x16xf32>,
    return
  }
  func.func @transform_0(%arg0: i32) -> (i32, i32) {
    %c0_i32 = arith.constant 0 : i32
    %c0_i32_0 = arith.constant 0 : i32
    return %arg0, %c0_i32 : i32, i32
  }
  func.func @transform_1(%arg0: i32) -> (i32, i32) {
    %c0_i32 = arith.constant 0 : i32
    %c0_i32_0 = arith.constant 0 : i32
    %c0_i32_1 = arith.constant 0 : i32
    return %c0_i32, %c0_i32_0 : i32, i32
  }
  func.func @transform_2(%arg0: i32) -> (i32, i32) {
    %c0_i32 = arith.constant 0 : i32
    %c0_i32_0 = arith.constant 0 : i32
    %c0_i32_1 = arith.constant 0 : i32
    return %c0_i32, %c0_i32_0 : i32, i32
  }
  func.func @transform_3(%arg0: i32) -> (i32, i32) {
    %c0_i32 = arith.constant 0 : i32
    %c0_i32_0 = arith.constant 0 : i32
    %c0_i32_1 = arith.constant 0 : i32
    return %c0_i32, %c0_i32_0 : i32, i32
  }
  func.func @transform_4(%arg0: i32) -> (i32, i32) {
    %c0_i32 = arith.constant 0 : i32
    %c0_i32_0 = arith.constant 0 : i32
    %c0_i32_1 = arith.constant 0 : i32
    return %c0_i32, %c0_i32_0 : i32, i32
  }
  func.func @transform_5(%arg0: i32) -> (i32, i32) {
    %c0_i32 = arith.constant 0 : i32
    %c0_i32_0 = arith.constant 0 : i32
    %c0_i32_1 = arith.constant 0 : i32
    return %c0_i32, %c0_i32_0 : i32, i32
  }
  func.func @transform_6(%arg0: i32) -> (i32, i32) {
    %c0_i32 = arith.constant 0 : i32
    %c0_i32_0 = arith.constant 0 : i32
    %c0_i32_1 = arith.constant 0 : i32
    return %c0_i32, %c0_i32_0 : i32, i32
  }
  func.func @transform_7(%arg0: i32) -> (i32, i32) {
    %c0_i32 = arith.constant 0 : i32
    %c0_i32_0 = arith.constant 0 : i32
    %c0_i32_1 = arith.constant 0 : i32
    return %c0_i32, %c0_i32_0 : i32, i32
  }
  func.func @transform_8(%arg0: i32) -> (i32, i32) {
    %c0_i32 = arith.constant 0 : i32
    %c0_i32_0 = arith.constant 0 : i32
    %c0_i32_1 = arith.constant 0 : i32
    return %c0_i32, %c0_i32_0 : i32, i32
  }
  func.func @transform_9(%arg0: i32) -> (i32, i32) {
    %c0_i32 = arith.constant 0 : i32
    %c0_i32_0 = arith.constant 0 : i32
    return %c0_i32, %arg0 : i32, i32
  }
}

</mosaic_0001>

<llo_original>
// kernel: tpu_custom_call.1
$region0: #{tpu_custom_call.1}
  #allocation0 [shape = 'u32[]', space=smem, size = 0x4, offset = 0x4, fixed_abs, tag = 'smem constant byte address 0x4 - core index']
  #allocation1 [shape = 'u32[144,128]{1,0:T(1,128)}', space=vmem, size = 0x12000, scoped, tag = 'internal scratch']
  #allocation2 [shape = 'f32[1,1]{1,0:T(1,128)S(1)}', space=vmem, size = 0x200, scoped, tag = 'scoped memory for tpu_custom_call.1']
  %s0 = inlined_call_operand.vmem [shape: f32[16,32], index: 0, kind: input, shape index: {}]
  %s1 = inlined_call_operand.vmem [shape: f32[16,32], index: 1, kind: input, shape index: {}]
  %s2 = inlined_call_operand.vmem [shape: f32[16,1], index: 2, kind: input, shape index: {}]
  %s3 = inlined_call_operand.vmem [shape: f32[8,16], index: 3, kind: input, shape index: {}]
  %s4 = inlined_call_operand.vmem [shape: f32[8,1], index: 4, kind: input, shape index: {}]
  %s5 = inlined_call_operand.vmem [shape: f32[4,8], index: 5, kind: input, shape index: {}]
  %s6 = inlined_call_operand.vmem [shape: f32[4,1], index: 6, kind: input, shape index: {}]
  %s7 = inlined_call_operand.vmem [shape: f32[4,1], index: 7, kind: input, shape index: {}]
  %s8 = inlined_call_operand.<no memory space> [shape: f32[1,1], index: 8, kind: input, shape index: {}]
  %s9 = inlined_call_operand.hbm [shape: f32[1,16], index: 9, kind: output, shape index: {}]
  %s10 = sld [smem:[#allocation0]]
  $region46: #{tpu_custom_call.1} parent=0
    _
  %s12 = ssub.s32 1, %s10
  %s13 = scalar_select 0, %s12, %s10
  %v14 = vstv %s8
  %15 = vst [vmem:[#allocation2] sm:$0x1] %v14
  $region1: #{tpu_custom_call.1} parent=0
    #allocation3 [shape = 'u8[512]{0}', space=vmem, size = 0x400, scoped, tag = 'output window, operand 0, single buffered']
    #allocation4 [shape = 's32[1]{0}', space=sflag, size = 0x4, scoped, tag = 'scoped memory for tpu_custom_call.1']
    %16 = vsyncpa [#allocation4], 0
    // Predicated region
    $region2: #{tpu_custom_call.1} parent=1 // pred_check
      _
    $region3: #{tpu_custom_call.1} parent=1 // pred_check_branch
      %18 = sbr.rel (0) target = $region5
    $region4: #{tpu_custom_call.1} parent=1 // pred_region
      _
    $region5: #{tpu_custom_call.1} parent=1 // pred_fallthru
      _
    // Predicated region
    $region6: #{tpu_custom_call.1} parent=1 // pred_check
      _
    $region7: #{tpu_custom_call.1} parent=1 // pred_check_branch
      %20 = sbr.rel (0) target = $region9
    $region8: #{tpu_custom_call.1} parent=1 // pred_region
      _
    $region9: #{tpu_custom_call.1} parent=1 // pred_fallthru
      _
    // Predicated region
    $region10: #{tpu_custom_call.1} parent=1 // pred_check
      _
    $region11: #{tpu_custom_call.1} parent=1 // pred_check_branch
      %22 = sbr.rel (0) target = $region13
    $region12: #{tpu_custom_call.1} parent=1 // pred_region
      _
    $region13: #{tpu_custom_call.1} parent=1 // pred_fallthru
      _
    // Predicated region
    $region14: #{tpu_custom_call.1} parent=1 // pred_check
      _
    $region15: #{tpu_custom_call.1} parent=1 // pred_check_branch
      %24 = sbr.rel (0) target = $region17
    $region16: #{tpu_custom_call.1} parent=1 // pred_region
      _
    $region17: #{tpu_custom_call.1} parent=1 // pred_fallthru
      _
    // Predicated region
    $region18: #{tpu_custom_call.1} parent=1 // pred_check
      _
    $region19: #{tpu_custom_call.1} parent=1 // pred_check_branch
      %26 = sbr.rel (0) target = $region21
    $region20: #{tpu_custom_call.1} parent=1 // pred_region
      _
    $region21: #{tpu_custom_call.1} parent=1 // pred_fallthru
      _
    // Predicated region
    $region22: #{tpu_custom_call.1} parent=1 // pred_check
      _
    $region23: #{tpu_custom_call.1} parent=1 // pred_check_branch
      %28 = sbr.rel (0) target = $region25
    $region24: #{tpu_custom_call.1} parent=1 // pred_region
      _
    $region25: #{tpu_custom_call.1} parent=1 // pred_fallthru
      _
    // Predicated region
    $region26: #{tpu_custom_call.1} parent=1 // pred_check
      _
    $region27: #{tpu_custom_call.1} parent=1 // pred_check_branch
      %30 = sbr.rel (0) target = $region29
    $region28: #{tpu_custom_call.1} parent=1 // pred_region
      _
    $region29: #{tpu_custom_call.1} parent=1 // pred_fallthru
      _
    // Predicated region
    $region30: #{tpu_custom_call.1} parent=1 // pred_check
      _
    $region31: #{tpu_custom_call.1} parent=1 // pred_check_branch
      %32 = sbr.rel (0) target = $region33
    $region32: #{tpu_custom_call.1} parent=1 // pred_region
      _
    $region33: #{tpu_custom_call.1} parent=1 // pred_fallthru
      _
    // Predicated region
    $region34: #{tpu_custom_call.1} parent=1 // pred_check
      _
    $region35: #{tpu_custom_call.1} parent=1 // pred_check_branch
      %34 = sbr.rel (0) target = $region37
    $region36: #{tpu_custom_call.1} parent=1 // pred_region
      _
    $region37: #{tpu_custom_call.1} parent=1 // pred_fallthru
      _
    %v35 = vld [vmem:[%s0] sm:$0xff]
    %v36 = vld [vmem:[%s0 + $0x8] sm:$0xff]
    %v37 = vld [vmem:[%s1] sm:$0xff]
    %v38 = vld [vmem:[%s1 + $0x8] sm:$0xff]
    %v39 = vld [vmem:[%s2] sm:$0xff]
    %v40 = vld [vmem:[%s2 + $0x8] sm:$0xff]
    %42 = vset.pattern.permute.xlu0 0
    %43 = vperm.xlu0 %42, %v39
    %v44 = vpop.permute.xlu0 %43
    %47 = vset.pattern.permute.xlu0 0
    %48 = vperm.xlu0 %47, %v40
    %v49 = vpop.permute.xlu0 %48
    %vm51 = vcmask 261120
    %v53 = vsel %vm51, %v37, 0
    %v56 = vsel %vm51, %v38, 0
    %v59 = vsel %vm51, %v35, 0
    %v62 = vsel %vm51, %v36, 0
    %64 = vmatprep.subr.mxu0 0.0
    %65 = vmatpush1.xpose.msra.mxu0 %v59
    %66 = vmatprep.subr.mxu0 0.0
    %67 = vmatpush1.xpose.msra.mxu0 %v62
    %68 = vmatprep.subr.mxu0 0.0
    %69 = vmatpush1.xpose.msra.mxu0 0.0
    %70 = vmatprep.subr.mxu0 0.0
    %71 = vmatpush1.xpose.msra.mxu0 0.0
    %72 = vmatprep.subr.mxu0 0.0
    %73 = vmatpush1.xpose.msra.mxu0 0.0
    %74 = vmatprep.subr.mxu0 0.0
    %75 = vmatpush1.xpose.msra.mxu0 0.0
    %76 = vmatprep.subr.mxu0 0.0
    %77 = vmatpush1.xpose.msra.mxu0 0.0
    %78 = vmatprep.subr.mxu0 0.0
    %79 = vmatpush1.xpose.msra.mxu0 0.0
    %80 = vmatprep.subr.mxu0 0.0
    %81 = vmatpush1.xpose.msra.mxu0 0.0
    %82 = vmatprep.subr.mxu0 0.0
    %83 = vmatpush1.xpose.msra.mxu0 0.0
    %84 = vmatprep.subr.mxu0 0.0
    %85 = vmatpush1.xpose.msra.mxu0 0.0
    %86 = vmatprep.subr.mxu0 0.0
    %87 = vmatpush1.xpose.msra.mxu0 0.0
    %88 = vmatprep.subr.mxu0 0.0
    %89 = vmatpush1.xpose.msra.mxu0 0.0
    %90 = vmatprep.subr.mxu0 0.0
    %91 = vmatpush1.xpose.msra.mxu0 0.0
    %92 = vmatprep.subr.mxu0 0.0
    %93 = vmatpush1.xpose.msra.mxu0 0.0
    %94 = vmatprep.subr.mxu0 0.0
    %95 = vmatpush1.xpose.msra.mxu0 0.0
    %96 = vmatprep.subr.mxu0 0.0
    %97 = vmatpush1.xpose.msra.mxu0 0.0
    %98 = vmatprep.subr.mxu0 0.0
    %99 = vmatpush1.xpose.msra.mxu0 0.0
    %100 = vmatprep.subr.mxu0 0.0
    %101 = vmatpush1.xpose.msra.mxu0 0.0
    %102 = vmatprep.subr.mxu0 0.0
    %103 = vmatpush1.xpose.msra.mxu0 0.0
    %104 = vmatprep.subr.mxu0 0.0
    %105 = vmatpush1.xpose.msra.mxu0 0.0
    %106 = vmatprep.subr.mxu0 0.0
    %107 = vmatpush1.xpose.msra.mxu0 0.0
    %108 = vmatprep.subr.mxu0 0.0
    %109 = vmatpush1.xpose.msra.mxu0 0.0
    %110 = vmatprep.subr.mxu0 0.0
    %111 = vmatpush1.xpose.msra.mxu0 0.0
    %112 = vmatprep.subr.mxu0 0.0
    %113 = vmatpush1.xpose.msra.mxu0 0.0
    %114 = vmatprep.subr.mxu0 0.0
    %115 = vmatpush1.xpose.msra.mxu0 0.0
    %116 = vmatprep.subr.mxu0 0.0
    %117 = vmatpush1.xpose.msra.mxu0 0.0
    %118 = vmatprep.subr.mxu0 0.0
    %119 = vmatpush1.xpose.msra.mxu0 0.0
    %120 = vmatprep.subr.mxu0 0.0
    %121 = vmatpush1.xpose.msra.mxu0 0.0
    %122 = vmatprep.subr.mxu0 0.0
    %123 = vmatpush1.xpose.msra.mxu0 0.0
    %124 = vmatprep.subr.mxu0 0.0
    %125 = vmatpush1.xpose.msra.mxu0 0.0
    %126 = vmatprep.subr.mxu0 0.0
    %127 = vmatpush1.xpose.msra.mxu0 0.0
    %128 = vmatprep.mubr.f32.mxu0 0.0
    %129 = vmatmul.mubr.f32.gmra.mrb[0].mxu0 %v53
    %v130 = vpop.f32.mrb[0].mxu0
    %v131 = vadd.f32 %v44, %v130
    %v132 = vpop.f32.mrb[0].mxu0
    %133 = vmatprep.mubr.f32.mxu0 0.0
    %134 = vmatmul.mubr.f32.gmra.mrb[0].mxu0 %v56
    %v135 = vpop.f32.mrb[0].mxu0
    %v136 = vadd.f32 %v49, %v135
    %v137 = vpop.f32.mrb[0].mxu0
    %138 = vdwg.mxu0
    %vm139 = vcmp.gt.f32.partialorder %v131, 0.0
    %vm140 = vcmp.gt.f32.partialorder %v136, 0.0
    %v141 = vmul.f32 %v131, 0.1
    %v142 = vmul.f32 %v136, 0.1
    %v143 = vsel %vm139, %v131, %v141
    %v144 = vsel %vm140, %v136, %v142
    %v145 = vld [vmem:[%s3] sm:$0xff]
    %v146 = vld [vmem:[%s4] sm:$0xff]
    %148 = vset.pattern.permute.xlu0 0
    %149 = vperm.xlu0 %148, %v146
    %v150 = vpop.permute.xlu0 %149
    %vm152 = vcmask 130048
    %v154 = vsel %vm152, %v145, 0
    %156 = vmatprep.subr.mxu0 0.0
    %157 = vmatpush1.msra.mxu0 %v143
    %158 = vmatprep.subr.mxu0 0.0
    %159 = vmatpush1.msra.mxu0 %v144
    %160 = vmatprep.subr.mxu0 0.0
    %161 = vmatpush1.msra.mxu0 0.0
    %162 = vmatprep.subr.mxu0 0.0
    %163 = vmatpush1.msra.mxu0 0.0
    %164 = vmatprep.subr.mxu0 0.0
    %165 = vmatpush1.msra.mxu0 0.0
    %166 = vmatprep.subr.mxu0 0.0
    %167 = vmatpush1.msra.mxu0 0.0
    %168 = vmatprep.subr.mxu0 0.0
    %169 = vmatpush1.msra.mxu0 0.0
    %170 = vmatprep.subr.mxu0 0.0
    %171 = vmatpush1.msra.mxu0 0.0
    %172 = vmatprep.subr.mxu0 0.0
    %173 = vmatpush1.msra.mxu0 0.0
    %174 = vmatprep.subr.mxu0 0.0
    %175 = vmatpush1.msra.mxu0 0.0
    %176 = vmatprep.subr.mxu0 0.0
    %177 = vmatpush1.msra.mxu0 0.0
    %178 = vmatprep.subr.mxu0 0.0
    %179 = vmatpush1.msra.mxu0 0.0
    %180 = vmatprep.subr.mxu0 0.0
    %181 = vmatpush1.msra.mxu0 0.0
    %182 = vmatprep.subr.mxu0 0.0
    %183 = vmatpush1.msra.mxu0 0.0
    %184 = vmatprep.subr.mxu0 0.0
    %185 = vmatpush1.msra.mxu0 0.0
    %186 = vmatprep.subr.mxu0 0.0
    %187 = vmatpush1.msra.mxu0 0.0
    %188 = vmatprep.subr.mxu0 0.0
    %189 = vmatpush1.msra.mxu0 0.0
    %190 = vmatprep.subr.mxu0 0.0
    %191 = vmatpush1.msra.mxu0 0.0
    %192 = vmatprep.subr.mxu0 0.0
    %193 = vmatpush1.msra.mxu0 0.0
    %194 = vmatprep.subr.mxu0 0.0
    %195 = vmatpush1.msra.mxu0 0.0
    %196 = vmatprep.subr.mxu0 0.0
    %197 = vmatpush1.msra.mxu0 0.0
    %198 = vmatprep.subr.mxu0 0.0
    %199 = vmatpush1.msra.mxu0 0.0
    %200 = vmatprep.subr.mxu0 0.0
    %201 = vmatpush1.msra.mxu0 0.0
    %202 = vmatprep.subr.mxu0 0.0
    %203 = vmatpush1.msra.mxu0 0.0
    %204 = vmatprep.subr.mxu0 0.0
    %205 = vmatpush1.msra.mxu0 0.0
    %206 = vmatprep.subr.mxu0 0.0
    %207 = vmatpush1.msra.mxu0 0.0
    %208 = vmatprep.subr.mxu0 0.0
    %209 = vmatpush1.msra.mxu0 0.0
    %210 = vmatprep.subr.mxu0 0.0
    %211 = vmatpush1.msra.mxu0 0.0
    %212 = vmatprep.subr.mxu0 0.0
    %213 = vmatpush1.msra.mxu0 0.0
    %214 = vmatprep.subr.mxu0 0.0
    %215 = vmatpush1.msra.mxu0 0.0
    %216 = vmatprep.subr.mxu0 0.0
    %217 = vmatpush1.msra.mxu0 0.0
    %218 = vmatprep.subr.mxu0 0.0
    %219 = vmatpush1.msra.mxu0 0.0
    %220 = vmatprep.mubr.f32.mxu0 0.0
    %221 = vmatmul.mubr.f32.gmra.mrb[0].mxu0 %v154
    %v222 = vpop.f32.mrb[0].mxu0
    %v223 = vadd.f32 %v150, %v222
    %v224 = vpop.f32.mrb[0].mxu0
    %225 = vdwg.mxu0
    %vm226 = vcmp.gt.f32.partialorder %v223, 0.0
    %v227 = vmul.f32 %v223, 0.1
    %v228 = vsel %vm226, %v223, %v227
    %v229 = vld [vmem:[%s5] sm:$0xf]
    %v230 = vld [vmem:[%s6] sm:$0xf]
    %232 = vset.pattern.permute.xlu0 0
    %233 = vperm.xlu0 %232, %v230
    %v234 = vpop.permute.xlu0 %233
    %vm236 = vcmask 64512
    %v238 = vsel %vm236, %v229, 0
    %240 = vmatprep.subr.mxu0 0.0
    %241 = vmatpush1.msra.mxu0 %v228
    %242 = vmatprep.subr.mxu0 0.0
    %243 = vmatpush1.msra.mxu0 0.0
    %244 = vmatprep.subr.mxu0 0.0
    %245 = vmatpush1.msra.mxu0 0.0
    %246 = vmatprep.subr.mxu0 0.0
    %247 = vmatpush1.msra.mxu0 0.0
    %248 = vmatprep.subr.mxu0 0.0
    %249 = vmatpush1.msra.mxu0 0.0
    %250 = vmatprep.subr.mxu0 0.0
    %251 = vmatpush1.msra.mxu0 0.0
    %252 = vmatprep.subr.mxu0 0.0
    %253 = vmatpush1.msra.mxu0 0.0
    %254 = vmatprep.subr.mxu0 0.0
    %255 = vmatpush1.msra.mxu0 0.0
    %256 = vmatprep.subr.mxu0 0.0
    %257 = vmatpush1.msra.mxu0 0.0
    %258 = vmatprep.subr.mxu0 0.0
    %259 = vmatpush1.msra.mxu0 0.0
    %260 = vmatprep.subr.mxu0 0.0
    %261 = vmatpush1.msra.mxu0 0.0
    %262 = vmatprep.subr.mxu0 0.0
    %263 = vmatpush1.msra.mxu0 0.0
    %264 = vmatprep.subr.mxu0 0.0
    %265 = vmatpush1.msra.mxu0 0.0
    %266 = vmatprep.subr.mxu0 0.0
    %267 = vmatpush1.msra.mxu0 0.0
    %268 = vmatprep.subr.mxu0 0.0
    %269 = vmatpush1.msra.mxu0 0.0
    %270 = vmatprep.subr.mxu0 0.0
    %271 = vmatpush1.msra.mxu0 0.0
    %272 = vmatprep.subr.mxu0 0.0
    %273 = vmatpush1.msra.mxu0 0.0
    %274 = vmatprep.subr.mxu0 0.0
    %275 = vmatpush1.msra.mxu0 0.0
    %276 = vmatprep.subr.mxu0 0.0
    %277 = vmatpush1.msra.mxu0 0.0
    %278 = vmatprep.subr.mxu0 0.0
    %279 = vmatpush1.msra.mxu0 0.0
    %280 = vmatprep.subr.mxu0 0.0
    %281 = vmatpush1.msra.mxu0 0.0
    %282 = vmatprep.subr.mxu0 0.0
    %283 = vmatpush1.msra.mxu0 0.0
    %284 = vmatprep.subr.mxu0 0.0
    %285 = vmatpush1.msra.mxu0 0.0
    %286 = vmatprep.subr.mxu0 0.0
    %287 = vmatpush1.msra.mxu0 0.0
    %288 = vmatprep.subr.mxu0 0.0
    %289 = vmatpush1.msra.mxu0 0.0
    %290 = vmatprep.subr.mxu0 0.0
    %291 = vmatpush1.msra.mxu0 0.0
    %292 = vmatprep.subr.mxu0 0.0
    %293 = vmatpush1.msra.mxu0 0.0
    %294 = vmatprep.subr.mxu0 0.0
    %295 = vmatpush1.msra.mxu0 0.0
    %296 = vmatprep.subr.mxu0 0.0
    %297 = vmatpush1.msra.mxu0 0.0
    %298 = vmatprep.subr.mxu0 0.0
    %299 = vmatpush1.msra.mxu0 0.0
    %300 = vmatprep.subr.mxu0 0.0
    %301 = vmatpush1.msra.mxu0 0.0
    %302 = vmatprep.subr.mxu0 0.0
    %303 = vmatpush1.msra.mxu0 0.0
    %304 = vmatprep.mubr.f32.mxu0 0.0
    %305 = vmatmul.mubr.f32.gmra.mrb[0].mxu0 %v238
    %v306 = vpop.f32.mrb[0].mxu0
    %v307 = vadd.f32 %v234, %v306
    %v308 = vpop.f32.mrb[0].mxu0
    %309 = vdwg.mxu0
    %vm310 = vcmp.gt.f32.partialorder %v307, 0.0
    %v311 = vmul.f32 %v307, 0.1
    %v312 = vsel %vm310, %v307, %v311
    %v313 = vld [vmem:[%s7] sm:$0xf]
    %315 = vset.pattern.permute.xlu0 0
    %316 = vperm.xlu0 %315, %v313
    %v317 = vpop.permute.xlu0 %316
    %v319 = vmul.f32 %v317, %v312
    %vm320 = vcmask 125952
    %v321 = vsel %vm320, %v319, 0.0
    %v322 = vrot.slane %v321, 4
    %v323 = vadd.f32 %v321, %v322
    %v324 = vrot.slane %v323, 2
    %v325 = vadd.f32 %v323, %v324
    %v326 = vrot.slane %v325, 1
    %v327 = vadd.f32 %v325, %v326
    %v328 = vld [vmem:[#allocation2] sm:$0x1]
    %330 = vset.pattern.permute.xlu0 0
    %331 = vperm.xlu0 %330, %v328
    %v332 = vpop.permute.xlu0 %331
    %v334 = vlaneseq
    %v335 = vshrl.u32 %v334, 7
    %v336 = vsub.s32 0, %v335
    %v337 = vrot.slane %v332, %v336
    %v338 = vadd.f32 %v327, %v337
    %vm339 = vcmp.gt.f32.partialorder %v338, 0.0
    %v340 = vmul.f32 %v338, 0.1
    %v341 = vsel %vm339, %v338, %v340
    %vm342 = vcmask 122880
    %343 = vst.msk [vmem:[#allocation3] sm:$0x1] %vm342, %v341
    // Predicated region
    $region38: #{tpu_custom_call.1} parent=1 // pred_check
      _
    $region39: #{tpu_custom_call.1} parent=1 // pred_check_branch
      %345 = sbr.rel (0) target = $region41
    $region40: #{tpu_custom_call.1} parent=1 // pred_region
      %s347 = ssub.s32 16, 16
      %348 = vsyncadd [#allocation4], %s347
      %s350 = sshll.u32 [#allocation3], 4
      %s351 = int_to_ptr.vmem [resolvable:$true] %s350
      %353 = dma.vmem_to_hbm [thread:$0]  %s351, 16, %s9, [#allocation4]
    $region41: #{tpu_custom_call.1} parent=1 // pred_fallthru
      _
    // Predicated region
    $region42: #{tpu_custom_call.1} parent=1 // pred_check
      _
    $region43: #{tpu_custom_call.1} parent=1 // pred_check_branch
      %355 = sbr.rel (0) target = $region45
    $region44: #{tpu_custom_call.1} parent=1 // pred_region
      %356 = dma.done [#allocation4], 16
    $region45: #{tpu_custom_call.1} parent=1 // pred_fallthru
      _
    %357 = vsyncpa [#allocation4], 1

</llo_original>
